<compile_context>
chip_gen: v7x
topology: tpu7x:2x2x1
jax: 0.10.0
libtpu: 0.0.40
codegen_flags: <defaults>
</compile_context>

<pallas_src>
import jax
import jax.numpy as jnp
import numpy as np
from jax.experimental import pallas as pl
from jax.experimental.pallas import tpu as pltpu

_SQRT1_2 = 0.7071067811865476
_LN_EPS = 1e-5


def _gelu_exact(v):
    # matches torch.nn.GELU() default (erf formulation)
    return 0.5 * v * (1.0 + jax.lax.erf(v * _SQRT1_2))


def biattn_kernel(x_ref, gamma_ref, beta_ref,
                  wgr_ref, bgr_ref, wlr_ref, blr_ref,
                  wcs_ref, bcs_ref, wssl_ref, wssg_ref, bss_ref,
                  o_ref):
    # x_ref block: (TB, H, TW, C)
    xin = x_ref[...]                                   # original dtype (kept for the gate)
    x = xin.astype(jnp.float32)
    TB, H, TW, C = x.shape
    R = wgr_ref.shape[1]

    # ---- LayerNorm over C (two-pass form: matches nn.LayerNorm numerics) ----
    mu = jnp.mean(x, axis=-1, keepdims=True)
    xc = x - mu
    var = jnp.mean(xc * xc, axis=-1, keepdims=True)
    xn = xc * jax.lax.rsqrt(var + _LN_EPS)
    xn = xn * gamma_ref[...] + beta_ref[...]           # (1, C) broadcast over channels

    # bf16 inputs: keep the dominant intermediate + MXU operands narrow
    # (statistics / matmul accumulations above and below stay fp32).
    mm_dtype = jnp.bfloat16 if xin.dtype == jnp.bfloat16 else jnp.float32
    xn = xn.astype(mm_dtype)

    # ---- global branch: mean over H, then reduce + GELU ----
    xg = jnp.mean(xn, axis=1, dtype=jnp.float32)       # (TB, TW, C), fp32 accumulation
    xg2d = _gelu_exact(
        jnp.dot(xg.reshape(TB * TW, C).astype(mm_dtype),
                wgr_ref[...].astype(mm_dtype),
                preferred_element_type=jnp.float32)
        + bgr_ref[...])                                # (TB*TW, R), fp32

    # ---- local branch: one big flattened MXU matmul ----
    x2d = xn.reshape(TB * H * TW, C)                   # free view (TW == W or TW % 8/16 == 0)
    xl2d = _gelu_exact(
        jnp.dot(x2d, wlr_ref[...].astype(mm_dtype),
                preferred_element_type=jnp.float32)
        + blr_ref[...])                                # (TB*H*TW, R), fp32

    # ---- channel attention ----
    c2d = jax.nn.sigmoid(
        jnp.dot(xg2d.astype(mm_dtype), wcs_ref[...].astype(mm_dtype),
                preferred_element_type=jnp.float32)
        + bcs_ref[...])                                # (TB*TW, C), fp32
    c_attn = c2d.reshape(TB, 1, TW, C)

    # ---- spatial attention (split form of spatial_select on cat([local, global])) ----
    s_local = jnp.sum(xl2d.reshape(TB, H, TW, R) * wssl_ref[...],
                      axis=-1, keepdims=True)          # (TB, H, TW, 1)
    s_global = jnp.sum(xg2d.reshape(TB, 1, TW, R) * wssg_ref[...],
                       axis=-1, keepdims=True)         # (TB, 1, TW, 1)
    s_attn = jax.nn.sigmoid(s_local + s_global + bss_ref[0, 0])   # scalar bias from SMEM

    # ---- epilogue: gate the original input with the two small factors ----
    # No full-block fp32 `attn` temporary; bf16 inputs get a bf16 epilogue.
    gated = xin * c_attn.astype(xin.dtype)             # broadcast over H
    gated = gated * s_attn.astype(xin.dtype)           # broadcast over C
    o_ref[...] = gated.astype(o_ref.dtype)


def _divisors_desc(n):
    return [d for d in range(n, 0, -1) if n % d == 0]


def _vmem_capacity_bytes():
    try:
        return int(pltpu.get_tpu_info().vmem_capacity_bytes)
    except Exception:
        return 64 * (1 << 20)             # conservative default (v7x per-TensorCore)


def _step_vmem_bytes(tb, H, tw, C, R, itemsize):
    """Per-grid-step VMEM footprint estimate (bytes), including fp32 temporaries."""
    blk = tb * H * tw * C
    px = tb * H * tw
    pipelined = 2 * 2 * blk * itemsize            # double-buffered input + output blocks
    x_f32 = blk * 4                               # fp32 upcast for LN statistics
    xn = blk * (2 if itemsize == 2 else 4)        # normalized activations (bf16 stays bf16)
    xl = px * R * 4                               # local-reduce activations (+ GELU temp)
    small = px * 4 + tb * tw * (2 * C + 2 * R) * 4  # s_attn, c_attn, xg, xg2d
    weights = (3 * C * R + 4 * C + 4 * R + 8) * 4
    return int(1.25 * (pipelined + x_f32 + xn + 2 * xl + small)) + weights


def _choose_tiles(B, H, W, C, R, dtype, vmem_capacity):
    """Largest tile under ~1/3 of physical VMEM, preferring contiguous full-W blocks."""
    itemsize = jnp.dtype(dtype).itemsize
    sub = 16 if itemsize == 2 else 8              # bf16 packs 16 rows per sublane group
    budget = vmem_capacity // 3                   # ~21 MiB (v7x) / ~42 MiB (v5e/v6e)

    # Prefer tw == W (fully contiguous DMA per (b, h) row); only consider
    # narrower sublane-friendly W tiles if a full-width block never fits.
    tw_cands = [W] + [d for d in _divisors_desc(W) if d != W and d % sub == 0]

    best = None
    for tw in tw_cands:
        for tb in _divisors_desc(B):              # descending: first fit is the largest
            if _step_vmem_bytes(tb, H, tw, C, R, itemsize) <= budget:
                cand = (tb * tw, tw, tb)          # ties broken by larger tw
                if best is None or cand > best:
                    best = cand
                break
        if best is not None and best[1] == W:
            break                                 # full-width fits: take it, stop looking
    if best is None:
        tb, tw = 1, tw_cands[-1]                  # TODO(synk): H-tiled two-pass fallback
    else:
        _, tw, tb = best
    return tb, tw


def biattn(x, params, *, tb=None, tw=None, min_grid_steps=2):
    (gamma, beta, wgr, bgr, wlr, blr, wcs, bcs, wssl_t, wssg_t, bss) = params
    B, H, W, C = x.shape
    R = wgr.shape[1]
    itemsize = jnp.dtype(x.dtype).itemsize
    sub = 16 if itemsize == 2 else 8

    vmem_cap = _vmem_capacity_bytes()
    auto_mode = tb is None and tw is None
    if tb is None or tw is None:
        auto_tb, auto_tw = _choose_tiles(B, H, W, C, R, x.dtype, vmem_cap)
        tb = auto_tb if tb is None else tb
        tw = auto_tw if tw is None else tw

    if auto_mode:
        # Guarantee >= min_grid_steps grid steps: v7x has 2 TensorCores (a 1-step
        # grid leaves one idle) and a single step also serializes DMA-in ->
        # compute -> DMA-out with no double-buffer overlap.  Split B first so W
        # stays fully contiguous; only split W as a last resort.
        def _shrink(n, t, keep_sub):
            cands = [d for d in _divisors_desc(n)
                     if d < t and (not keep_sub or d % sub == 0)]
            return cands[0] if cands else t

        while (B // tb) * (W // tw) < min_grid_steps:
            if tb > 1:
                tb = _shrink(B, tb, keep_sub=False)
            else:
                new_tw = _shrink(W, tw, keep_sub=True)
                if new_tw == tw:
                    break
                tw = new_tw

    assert B % tb == 0 and W % tw == 0, "tile sizes must divide (B, W)"

    est = _step_vmem_bytes(tb, H, tw, C, R, itemsize)
    # scoped-VMEM limit: generous headroom over the estimate, capped below physical
    vmem_limit = int(min(int(0.75 * vmem_cap), max(32 * (1 << 20), 2 * est)))

    def wfull(shape):
        return pl.BlockSpec(shape, lambda bi, wi: (0, 0))

    return pl.pallas_call(
        biattn_kernel,
        out_shape=jax.ShapeDtypeStruct(x.shape, x.dtype),
        grid=(B // tb, W // tw),
        in_specs=[
            pl.BlockSpec((tb, H, tw, C), lambda bi, wi: (bi, 0, wi, 0)),   # x
            wfull((1, C)), wfull((1, C)),                                  # LN gamma, beta
            wfull((C, R)), wfull((1, R)),                                  # global_reduce W, b
            wfull((C, R)), wfull((1, R)),                                  # local_reduce W, b
            wfull((R, C)), wfull((1, C)),                                  # channel_select W, b
            wfull((1, R)), wfull((1, R)),                                  # spatial_select W halves
            pl.BlockSpec(memory_space=pltpu.MemorySpace.SMEM),             # spatial_select bias (scalar)
        ],
        out_specs=pl.BlockSpec((tb, H, tw, C), lambda bi, wi: (bi, 0, wi, 0)),
        compiler_params=pltpu.CompilerParams(
            dimension_semantics=("parallel", "parallel"),
            vmem_limit_bytes=vmem_limit,
        ),
    )(x, gamma, beta, wgr, bgr, wlr, blr, wcs, bcs, wssl_t, wssg_t, bss)


def biattn_ref(x, params):
    # pure-JAX reference mirroring the PyTorch forward
    (gamma, beta, wgr, bgr, wlr, blr, wcs, bcs, wssl_t, wssg_t, bss) = params
    mu = x.mean(-1, keepdims=True)
    var = ((x - mu) ** 2).mean(-1, keepdims=True)
    xn = (x - mu) / jnp.sqrt(var + _LN_EPS) * gamma.reshape(-1) + beta.reshape(-1)
    xg = xn.mean(1, keepdims=True)                                      # (B,1,W,C)
    xg = _gelu_exact(xg @ wgr + bgr.reshape(-1))                        # (B,1,W,R)
    xl = _gelu_exact(xn @ wlr + blr.reshape(-1))                        # (B,H,W,R)
    c_attn = jax.nn.sigmoid(xg @ wcs + bcs.reshape(-1))                 # (B,1,W,C)
    s_lin = ((xl * wssl_t.reshape(-1)).sum(-1, keepdims=True)
             + (xg * wssg_t.reshape(-1)).sum(-1, keepdims=True)
             + bss.reshape(()))
    s_attn = jax.nn.sigmoid(s_lin)                                      # (B,H,W,1)
    return x * (c_attn * s_attn)


if __name__ == "__main__":
    key = jax.random.PRNGKey(0)
    B, H, W, C = 2, 8, 8, 32
    R = int(C * 0.25)                       # reduce_channels = 8

    keys = jax.random.split(key, 11)
    x = jax.random.normal(keys[0], (B, H, W, C), jnp.float32)

    gamma = 1.0 + 0.1 * jax.random.normal(keys[1], (1, C), jnp.float32)
    beta = 0.1 * jax.random.normal(keys[2], (1, C), jnp.float32)
    wgr = 0.1 * jax.random.normal(keys[3], (C, R), jnp.float32)   # global_reduce.weight.T
    bgr = 0.1 * jax.random.normal(keys[4], (1, R), jnp.float32)
    wlr = 0.1 * jax.random.normal(keys[5], (C, R), jnp.float32)   # local_reduce.weight.T
    blr = 0.1 * jax.random.normal(keys[6], (1, R), jnp.float32)
    wcs = 0.1 * jax.random.normal(keys[7], (R, C), jnp.float32)   # channel_select.weight.T
    bcs = 0.1 * jax.random.normal(keys[8], (1, C), jnp.float32)
    wss = 0.1 * jax.random.normal(keys[9], (2 * R, 1), jnp.float32)  # spatial_select.weight.T
    wssl_t = wss[:R].T                                            # (1, R) — local half
    wssg_t = wss[R:].T                                            # (1, R) — global half
    bss = 0.1 * jax.random.normal(keys[10], (1, 1), jnp.float32)

    params = (gamma, beta, wgr, bgr, wlr, blr, wcs, bcs, wssl_t, wssg_t, bss)

    # main config: auto tiling (forced to >= 2 grid steps -> grid (2, 1) here)
    out = jax.block_until_ready(biattn(x, params))
    ref = biattn_ref(x, params)
    np.testing.assert_allclose(np.asarray(out), np.asarray(ref), atol=1e-5, rtol=1e-5)

    # second config exercising the explicit (batch-tile, W-tile) grid
    x2 = jax.random.normal(keys[0], (4, 8, 16, C), jnp.float32)
    out2 = jax.block_until_ready(biattn(x2, params, tb=1, tw=8))   # grid = (4, 2)
    ref2 = biattn_ref(x2, params)
    np.testing.assert_allclose(np.asarray(out2), np.asarray(ref2), atol=1e-5, rtol=1e-5)

    print("KERNEL_OK")
</pallas_src>

<mosaic_0001>
module attributes {stable_mosaic.version = 11 : i64} {
  func.func @biattn_kernel(%arg0: i32, %arg1: i32, %arg2: memref<1x8x8x32xf32, #tpu.memory_space<vmem>>, %arg3: memref<1x32xf32, #tpu.memory_space<vmem>>, %arg4: memref<1x32xf32, #tpu.memory_space<vmem>>, %arg5: memref<32x8xf32, #tpu.memory_space<vmem>>, %arg6: memref<1x8xf32, #tpu.memory_space<vmem>>, %arg7: memref<32x8xf32, #tpu.memory_space<vmem>>, %arg8: memref<1x8xf32, #tpu.memory_space<vmem>>, %arg9: memref<8x32xf32, #tpu.memory_space<vmem>>, %arg10: memref<1x32xf32, #tpu.memory_space<vmem>>, %arg11: memref<1x8xf32, #tpu.memory_space<vmem>>, %arg12: memref<1x8xf32, #tpu.memory_space<vmem>>, %arg13: memref<1x1xf32, #tpu.memory_space<smem>>, %arg14: memref<1x8x8x32xf32, #tpu.memory_space<vmem>>) attributes {dimension_semantics = [#tpu.dimension_semantics<parallel>, #tpu.dimension_semantics<parallel>], iteration_bounds = array<i64: 2, 1>, scalar_prefetch = 0 : i64, scratch_operands = 0 : i64, tpu.core_type = #tpu.core_type<tc>, window_params = [{transform_indices = @transform_0, window_bounds = array<i64: 1, 8, 8, 32>}, {pipeline_mode = #tpu.pipeline_mode<synchronous>, transform_indices = @transform_1, window_bounds = array<i64: 1, 32>}, {pipeline_mode = #tpu.pipeline_mode<synchronous>, transform_indices = @transform_2, window_bounds = array<i64: 1, 32>}, {pipeline_mode = #tpu.pipeline_mode<synchronous>, transform_indices = @transform_3, window_bounds = array<i64: 32, 8>}, {pipeline_mode = #tpu.pipeline_mode<synchronous>, transform_indices = @transform_4, window_bounds = array<i64: 1, 8>}, {pipeline_mode = #tpu.pipeline_mode<synchronous>, transform_indices = @transform_5, window_bounds = array<i64: 32, 8>}, {pipeline_mode = #tpu.pipeline_mode<synchronous>, transform_indices = @transform_6, window_bounds = array<i64: 1, 8>}, {pipeline_mode = #tpu.pipeline_mode<synchronous>, transform_indices = @transform_7, window_bounds = array<i64: 8, 32>}, {pipeline_mode = #tpu.pipeline_mode<synchronous>, transform_indices = @transform_8, window_bounds = array<i64: 1, 32>}, {pipeline_mode = #tpu.pipeline_mode<synchronous>, transform_indices = @transform_9, window_bounds = array<i64: 1, 8>}, {pipeline_mode = #tpu.pipeline_mode<synchronous>, transform_indices = @transform_10, window_bounds = array<i64: 1, 8>}, {transform_indices = @transform_11, window_bounds = array<i64: 1, 1>}, {transform_indices = @transform_12, window_bounds = array<i64: 1, 8, 8, 32>}]} {
    %c0 = arith.constant 0 : index
    %c0_0 = arith.constant 0 : index
    %c0_1 = arith.constant 0 : index
    %c0_2 = arith.constant 0 : index
    %0 = vector.load %arg2[%c0, %c0_0, %c0_1, %c0_2] : memref<1x8x8x32xf32, #tpu.memory_space<vmem>>, vector<1x8x8x32xf32>
    %cst = arith.constant dense<0.000000e+00> : vector<1x8x8xf32>
    %1 = vector.multi_reduction <add>, %0, %cst [3] : vector<1x8x8x32xf32> to vector<1x8x8xf32>
    %2 = vector.shape_cast %1 : vector<1x8x8xf32> to vector<1x8x8x1xf32>
    %cst_3 = arith.constant 3.200000e+01 : f32
    %3 = vector.broadcast %cst_3 : f32 to vector<1x8x8x1xf32>
    %4 = arith.divf %2, %3 : vector<1x8x8x1xf32>
    %5 = vector.broadcast %4 : vector<1x8x8x1xf32> to vector<1x8x8x32xf32>
    %6 = arith.subf %0, %5 : vector<1x8x8x32xf32>
    %7 = arith.mulf %6, %6 : vector<1x8x8x32xf32>
    %cst_4 = arith.constant dense<0.000000e+00> : vector<1x8x8xf32>
    %8 = vector.multi_reduction <add>, %7, %cst_4 [3] : vector<1x8x8x32xf32> to vector<1x8x8xf32>
    %9 = vector.shape_cast %8 : vector<1x8x8xf32> to vector<1x8x8x1xf32>
    %cst_5 = arith.constant 3.200000e+01 : f32
    %10 = vector.broadcast %cst_5 : f32 to vector<1x8x8x1xf32>
    %11 = arith.divf %9, %10 : vector<1x8x8x1xf32>
    %cst_6 = arith.constant 9.99999974E-6 : f32
    %12 = vector.broadcast %cst_6 : f32 to vector<1x8x8x1xf32>
    %13 = arith.addf %11, %12 : vector<1x8x8x1xf32>
    %14 = math.rsqrt %13 : vector<1x8x8x1xf32>
    %15 = vector.broadcast %14 : vector<1x8x8x1xf32> to vector<1x8x8x32xf32>
    %16 = arith.mulf %6, %15 : vector<1x8x8x32xf32>
    %c0_7 = arith.constant 0 : index
    %c0_8 = arith.constant 0 : index
    %17 = vector.load %arg3[%c0_7, %c0_8] : memref<1x32xf32, #tpu.memory_space<vmem>>, vector<1x32xf32>
    %18 = vector.shape_cast %17 : vector<1x32xf32> to vector<1x1x1x32xf32>
    %19 = vector.broadcast %18 : vector<1x1x1x32xf32> to vector<1x8x8x32xf32>
    %20 = arith.mulf %16, %19 : vector<1x8x8x32xf32>
    %c0_9 = arith.constant 0 : index
    %c0_10 = arith.constant 0 : index
    %21 = vector.load %arg4[%c0_9, %c0_10] : memref<1x32xf32, #tpu.memory_space<vmem>>, vector<1x32xf32>
    %22 = vector.shape_cast %21 : vector<1x32xf32> to vector<1x1x1x32xf32>
    %23 = vector.broadcast %22 : vector<1x1x1x32xf32> to vector<1x8x8x32xf32>
    %24 = arith.addf %20, %23 : vector<1x8x8x32xf32>
    %cst_11 = arith.constant dense<0.000000e+00> : vector<1x8x32xf32>
    %25 = vector.multi_reduction <add>, %24, %cst_11 [1] : vector<1x8x8x32xf32> to vector<1x8x32xf32>
    %cst_12 = arith.constant 8.000000e+00 : f32
    %26 = vector.broadcast %cst_12 : f32 to vector<1x8x32xf32>
    %27 = arith.divf %25, %26 : vector<1x8x32xf32>
    %28 = vector.shape_cast %27 : vector<1x8x32xf32> to vector<8x32xf32>
    %c0_13 = arith.constant 0 : index
    %c0_14 = arith.constant 0 : index
    %29 = vector.load %arg5[%c0_13, %c0_14] : memref<32x8xf32, #tpu.memory_space<vmem>>, vector<32x8xf32>
    %cst_15 = arith.constant dense<0.000000e+00> : vector<8x8xf32>
    %30 = tpu.matmul %28, %29, %cst_15 {dimension_numbers = #tpu.dot_dimension_numbers<[1], [0], [0], [1], [0, 0, 1, 1], [], []>} : vector<8x32xf32>, vector<32x8xf32>, vector<8x8xf32> -> vector<8x8xf32>
    %c0_16 = arith.constant 0 : index
    %c0_17 = arith.constant 0 : index
    %31 = vector.load %arg6[%c0_16, %c0_17] : memref<1x8xf32, #tpu.memory_space<vmem>>, vector<1x8xf32>
    %32 = vector.broadcast %31 : vector<1x8xf32> to vector<8x8xf32>
    %33 = arith.addf %30, %32 : vector<8x8xf32>
    %cst_18 = arith.constant 5.000000e-01 : f32
    %34 = vector.broadcast %cst_18 : f32 to vector<8x8xf32>
    %35 = arith.mulf %34, %33 : vector<8x8xf32>
    %cst_19 = arith.constant 0.707106769 : f32
    %36 = vector.broadcast %cst_19 : f32 to vector<8x8xf32>
    %37 = arith.mulf %33, %36 : vector<8x8xf32>
    %38 = math.erf %37 : vector<8x8xf32>
    %cst_20 = arith.constant 1.000000e+00 : f32
    %39 = vector.broadcast %cst_20 : f32 to vector<8x8xf32>
    %40 = arith.addf %39, %38 : vector<8x8xf32>
    %41 = arith.mulf %35, %40 : vector<8x8xf32>
    %42 = vector.shape_cast %24 : vector<1x8x8x32xf32> to vector<64x32xf32>
    %c0_21 = arith.constant 0 : index
    %c0_22 = arith.constant 0 : index
    %43 = vector.load %arg7[%c0_21, %c0_22] : memref<32x8xf32, #tpu.memory_space<vmem>>, vector<32x8xf32>
    %cst_23 = arith.constant dense<0.000000e+00> : vector<64x8xf32>
    %44 = tpu.matmul %42, %43, %cst_23 {dimension_numbers = #tpu.dot_dimension_numbers<[1], [0], [0], [1], [0, 0, 1, 1], [], []>} : vector<64x32xf32>, vector<32x8xf32>, vector<64x8xf32> -> vector<64x8xf32>
    %c0_24 = arith.constant 0 : index
    %c0_25 = arith.constant 0 : index
    %45 = vector.load %arg8[%c0_24, %c0_25] : memref<1x8xf32, #tpu.memory_space<vmem>>, vector<1x8xf32>
    %46 = vector.broadcast %45 : vector<1x8xf32> to vector<64x8xf32>
    %47 = arith.addf %44, %46 : vector<64x8xf32>
    %cst_26 = arith.constant 5.000000e-01 : f32
    %48 = vector.broadcast %cst_26 : f32 to vector<64x8xf32>
    %49 = arith.mulf %48, %47 : vector<64x8xf32>
    %cst_27 = arith.constant 0.707106769 : f32
    %50 = vector.broadcast %cst_27 : f32 to vector<64x8xf32>
    %51 = arith.mulf %47, %50 : vector<64x8xf32>
    %52 = math.erf %51 : vector<64x8xf32>
    %cst_28 = arith.constant 1.000000e+00 : f32
    %53 = vector.broadcast %cst_28 : f32 to vector<64x8xf32>
    %54 = arith.addf %53, %52 : vector<64x8xf32>
    %55 = arith.mulf %49, %54 : vector<64x8xf32>
    %c0_29 = arith.constant 0 : index
    %c0_30 = arith.constant 0 : index
    %56 = vector.load %arg9[%c0_29, %c0_30] : memref<8x32xf32, #tpu.memory_space<vmem>>, vector<8x32xf32>
    %cst_31 = arith.constant dense<0.000000e+00> : vector<8x32xf32>
    %57 = tpu.matmul %41, %56, %cst_31 {dimension_numbers = #tpu.dot_dimension_numbers<[1], [0], [0], [1], [0, 0, 1, 1], [], []>} : vector<8x8xf32>, vector<8x32xf32>, vector<8x32xf32> -> vector<8x32xf32>
    %c0_32 = arith.constant 0 : index
    %c0_33 = arith.constant 0 : index
    %58 = vector.load %arg10[%c0_32, %c0_33] : memref<1x32xf32, #tpu.memory_space<vmem>>, vector<1x32xf32>
    %59 = vector.broadcast %58 : vector<1x32xf32> to vector<8x32xf32>
    %60 = arith.addf %57, %59 : vector<8x32xf32>
    %61 = arith.negf %60 : vector<8x32xf32>
    %62 = math.exp %61 : vector<8x32xf32>
    %cst_34 = arith.constant 1.000000e+00 : f32
    %63 = vector.broadcast %cst_34 : f32 to vector<8x32xf32>
    %64 = arith.addf %63, %62 : vector<8x32xf32>
    %65 = arith.divf %63, %64 : vector<8x32xf32>
    %66 = vector.shape_cast %65 : vector<8x32xf32> to vector<1x1x8x32xf32>
    %67 = vector.shape_cast %55 : vector<64x8xf32> to vector<1x8x8x8xf32>
    %c0_35 = arith.constant 0 : index
    %c0_36 = arith.constant 0 : index
    %68 = vector.load %arg11[%c0_35, %c0_36] : memref<1x8xf32, #tpu.memory_space<vmem>>, vector<1x8xf32>
    %69 = vector.shape_cast %68 : vector<1x8xf32> to vector<1x1x1x8xf32>
    %70 = vector.broadcast %69 : vector<1x1x1x8xf32> to vector<1x8x8x8xf32>
    %71 = arith.mulf %67, %70 : vector<1x8x8x8xf32>
    %cst_37 = arith.constant dense<0.000000e+00> : vector<1x8x8xf32>
    %72 = vector.multi_reduction <add>, %71, %cst_37 [3] : vector<1x8x8x8xf32> to vector<1x8x8xf32>
    %73 = vector.shape_cast %72 : vector<1x8x8xf32> to vector<1x8x8x1xf32>
    %74 = vector.shape_cast %41 : vector<8x8xf32> to vector<1x1x8x8xf32>
    %c0_38 = arith.constant 0 : index
    %c0_39 = arith.constant 0 : index
    %75 = vector.load %arg12[%c0_38, %c0_39] : memref<1x8xf32, #tpu.memory_space<vmem>>, vector<1x8xf32>
    %76 = vector.shape_cast %75 : vector<1x8xf32> to vector<1x1x1x8xf32>
    %77 = vector.broadcast %76 : vector<1x1x1x8xf32> to vector<1x1x8x8xf32>
    %78 = arith.mulf %74, %77 : vector<1x1x8x8xf32>
    %cst_40 = arith.constant dense<0.000000e+00> : vector<1x1x8xf32>
    %79 = vector.multi_reduction <add>, %78, %cst_40 [3] : vector<1x1x8x8xf32> to vector<1x1x8xf32>
    %80 = vector.shape_cast %79 : vector<1x1x8xf32> to vector<1x1x8x1xf32>
    %81 = vector.broadcast %80 : vector<1x1x8x1xf32> to vector<1x8x8x1xf32>
    %82 = arith.addf %73, %81 : vector<1x8x8x1xf32>
    %c0_41 = arith.constant 0 : index
    %c0_42 = arith.constant 0 : index
    %83 = memref.load %arg13[%c0_41, %c0_42] : memref<1x1xf32, #tpu.memory_space<smem>>
    %84 = vector.broadcast %83 : f32 to vector<1x8x8x1xf32>
    %85 = arith.addf %82, %84 : vector<1x8x8x1xf32>
    %86 = arith.negf %85 : vector<1x8x8x1xf32>
    %87 = math.exp %86 : vector<1x8x8x1xf32>
    %cst_43 = arith.constant 1.000000e+00 : f32
    %88 = vector.broadcast %cst_43 : f32 to vector<1x8x8x1xf32>
    %89 = arith.addf %88, %87 : vector<1x8x8x1xf32>
    %90 = arith.divf %88, %89 : vector<1x8x8x1xf32>
    %91 = vector.broadcast %66 : vector<1x1x8x32xf32> to vector<1x8x8x32xf32>
    %92 = arith.mulf %0, %91 : vector<1x8x8x32xf32>
    %93 = vector.broadcast %90 : vector<1x8x8x1xf32> to vector<1x8x8x32xf32>
    %94 = arith.mulf %92, %93 : vector<1x8x8x32xf32>
    %c0_44 = arith.constant 0 : index
    %c0_45 = arith.constant 0 : index
    %c0_46 = arith.constant 0 : index
    %c0_47 = arith.constant 0 : index
    %95 = vector.load %arg14[%c0_44, %c0_45, %c0_46, %c0_47] : memref<1x8x8x32xf32, #tpu.memory_space<vmem>>, vector<1x8x8x32xf32>
    tpu.vector_store %arg14[%c0_44, %c0_45, %c0_46, %c0_47], %94 {strides = array<i32>} : memref<1x8x8x32xf32, #tpu.memory_space<vmem>>, vector<1x8x8x32xf32>,
    return
  }
  func.func @transform_0(%arg0: i32, %arg1: i32) -> (i32, i32, i32, i32) {
    %c0_i32 = arith.constant 0 : i32
    %c0_i32_0 = arith.constant 0 : i32
    %c0_i32_1 = arith.constant 0 : i32
    return %arg0, %c0_i32, %arg1, %c0_i32_0 : i32, i32, i32, i32
  }
  func.func @transform_1(%arg0: i32, %arg1: i32) -> (i32, i32) {
    %c0_i32 = arith.constant 0 : i32
    %c0_i32_0 = arith.constant 0 : i32
    %c0_i32_1 = arith.constant 0 : i32
    return %c0_i32, %c0_i32_0 : i32, i32
  }
  func.func @transform_2(%arg0: i32, %arg1: i32) -> (i32, i32) {
    %c0_i32 = arith.constant 0 : i32
    %c0_i32_0 = arith.constant 0 : i32
    %c0_i32_1 = arith.constant 0 : i32
    return %c0_i32, %c0_i32_0 : i32, i32
  }
  func.func @transform_3(%arg0: i32, %arg1: i32) -> (i32, i32) {
    %c0_i32 = arith.constant 0 : i32
    %c0_i32_0 = arith.constant 0 : i32
    %c0_i32_1 = arith.constant 0 : i32
    return %c0_i32, %c0_i32_0 : i32, i32
  }
  func.func @transform_4(%arg0: i32, %arg1: i32) -> (i32, i32) {
    %c0_i32 = arith.constant 0 : i32
    %c0_i32_0 = arith.constant 0 : i32
    %c0_i32_1 = arith.constant 0 : i32
    return %c0_i32, %c0_i32_0 : i32, i32
  }
  func.func @transform_5(%arg0: i32, %arg1: i32) -> (i32, i32) {
    %c0_i32 = arith.constant 0 : i32
    %c0_i32_0 = arith.constant 0 : i32
    %c0_i32_1 = arith.constant 0 : i32
    return %c0_i32, %c0_i32_0 : i32, i32
  }
  func.func @transform_6(%arg0: i32, %arg1: i32) -> (i32, i32) {
    %c0_i32 = arith.constant 0 : i32
    %c0_i32_0 = arith.constant 0 : i32
    %c0_i32_1 = arith.constant 0 : i32
    return %c0_i32, %c0_i32_0 : i32, i32
  }
  func.func @transform_7(%arg0: i32, %arg1: i32) -> (i32, i32) {
    %c0_i32 = arith.constant 0 : i32
    %c0_i32_0 = arith.constant 0 : i32
    %c0_i32_1 = arith.constant 0 : i32
    return %c0_i32, %c0_i32_0 : i32, i32
  }
  func.func @transform_8(%arg0: i32, %arg1: i32) -> (i32, i32) {
    %c0_i32 = arith.constant 0 : i32
    %c0_i32_0 = arith.constant 0 : i32
    %c0_i32_1 = arith.constant 0 : i32
    return %c0_i32, %c0_i32_0 : i32, i32
  }
  func.func @transform_9(%arg0: i32, %arg1: i32) -> (i32, i32) {
    %c0_i32 = arith.constant 0 : i32
    %c0_i32_0 = arith.constant 0 : i32
    %c0_i32_1 = arith.constant 0 : i32
    return %c0_i32, %c0_i32_0 : i32, i32
  }
  func.func @transform_10(%arg0: i32, %arg1: i32) -> (i32, i32) {
    %c0_i32 = arith.constant 0 : i32
    %c0_i32_0 = arith.constant 0 : i32
    %c0_i32_1 = arith.constant 0 : i32
    return %c0_i32, %c0_i32_0 : i32, i32
  }
  func.func @transform_11(%arg0: i32, %arg1: i32) -> (i32, i32) {
    %c0_i32 = arith.constant 0 : i32
    %c0_i32_0 = arith.constant 0 : i32
    %c0_i32_1 = arith.constant 0 : i32
    return %c0_i32, %c0_i32_0 : i32, i32
  }
  func.func @transform_12(%arg0: i32, %arg1: i32) -> (i32, i32, i32, i32) {
    %c0_i32 = arith.constant 0 : i32
    %c0_i32_0 = arith.constant 0 : i32
    %c0_i32_1 = arith.constant 0 : i32
    return %arg0, %c0_i32, %arg1, %c0_i32_0 : i32, i32, i32, i32
  }
}

</mosaic_0001>

<llo_original>
// kernel: tpu_custom_call.1
$region0: #{tpu_custom_call.1}
  #allocation0 [shape = 'u32[]', space=smem, size = 0x4, offset = 0x4, fixed_abs, tag = 'smem constant byte address 0x4 - core index']
  #allocation1 [shape = 'u32[144,128]{1,0:T(1,128)}', space=vmem, size = 0x12000, scoped, tag = 'internal scratch']
  #allocation2 [shape = 'f32[1,1]{1,0:T(1,128)S(6)}', space=smem, size = 0x200, scoped, tag = 'scoped memory for tpu_custom_call.1']
  %s0 = inlined_call_operand.hbm [shape: f32[2,8,8,32], index: 0, kind: input, shape index: {}]
  %s1 = inlined_call_operand.vmem [shape: f32[1,32], index: 1, kind: input, shape index: {}]
  %s2 = inlined_call_operand.vmem [shape: f32[1,32], index: 2, kind: input, shape index: {}]
  %s3 = inlined_call_operand.vmem [shape: f32[32,8], index: 3, kind: input, shape index: {}]
  %s4 = inlined_call_operand.vmem [shape: f32[1,8], index: 4, kind: input, shape index: {}]
  %s5 = inlined_call_operand.vmem [shape: f32[32,8], index: 5, kind: input, shape index: {}]
  %s6 = inlined_call_operand.vmem [shape: f32[1,8], index: 6, kind: input, shape index: {}]
  %s7 = inlined_call_operand.vmem [shape: f32[8,32], index: 7, kind: input, shape index: {}]
  %s8 = inlined_call_operand.vmem [shape: f32[1,32], index: 8, kind: input, shape index: {}]
  %s9 = inlined_call_operand.vmem [shape: f32[1,8], index: 9, kind: input, shape index: {}]
  %s10 = inlined_call_operand.vmem [shape: f32[1,8], index: 10, kind: input, shape index: {}]
  %s11 = inlined_call_operand.<no memory space> [shape: f32[1,1], index: 11, kind: input, shape index: {}]
  %s12 = inlined_call_operand.hbm [shape: f32[2,8,8,32], index: 12, kind: output, shape index: {}]
  %s13 = sld [smem:[#allocation0]]
  $region85: #{tpu_custom_call.1} parent=0
    _
  %s15 = ssub.s32 1, %s13
  %s16 = scalar_select 0, %s15, %s13
  %17 = sst [smem:[#allocation2]] %s11
  $region1: #{tpu_custom_call.1} parent=0
    #allocation3 [shape = 'u8[65536]{0}', space=vmem, size = 0x10000, scoped, tag = 'input window, operand 0']
    #allocation4 [shape = 's32[2]{0}', space=sflag, size = 0x8, scoped, tag = 'scoped memory for tpu_custom_call.1']
    #allocation5 [shape = 's32[2]{0}', space=sflag, size = 0x8, scoped, tag = 'scoped memory for tpu_custom_call.1']
    #allocation6 [shape = 'u8[65536]{0}', space=vmem, size = 0x10000, scoped, tag = 'output window, operand 0']
    %18 = vsyncpa [#allocation4], 0
    %s19 = scalar_lea.sflag [#allocation4], 1
    %20 = vsyncpa %s19, 0
    %21 = vsyncpa [#allocation5], 0
    %s22 = scalar_lea.sflag [#allocation5], 1
    %23 = vsyncpa %s22, 0
    loop: start=0, step=1, limit=4
    $region2: #{tpu_custom_call.1} parent=1 // loop_pre_header
      _
    $region3: #{tpu_custom_call.1} parent=1 // loop_header
      %s25 = sphi 0, %s29
      %p26 = scmp.ge.s32.totalorder %s25, 4
      %s32 = sphi 0, %s44
      %s33 = sphi 0, %s40
      %s34 = sphi 0, %s32
      %s35 = sphi 0, %s33
      %s36 = sphi 0, %s34
      %s37 = sphi 0, %s35
      %s49 = sphi 0, %s51
      %s52 = sphi 0, %s49
      %s53 = sphi 0, %s52
      %s69 = sphi 0, %s53
      %s73 = sphi 0, %s73
      %s75 = sphi 0, %s73
      %s76 = sphi 0, %s75
      %s90 = sphi 0, %s76
      %s94 = sphi 0, %s94
      %s96 = sphi 0, %s94
      %s97 = sphi 0, %s96
      %s111 = sphi 0, %s97
      %s115 = sphi 0, %s115
      %s117 = sphi 0, %s115
      %s118 = sphi 0, %s117
      %s132 = sphi 0, %s118
      %s136 = sphi 0, %s136
      %s138 = sphi 0, %s136
      %s139 = sphi 0, %s138
      %s153 = sphi 0, %s139
      %s157 = sphi 0, %s157
      %s159 = sphi 0, %s157
      %s160 = sphi 0, %s159
      %s174 = sphi 0, %s160
      %s178 = sphi 0, %s178
      %s180 = sphi 0, %s178
      %s181 = sphi 0, %s180
      %s195 = sphi 0, %s181
      %s199 = sphi 0, %s199
      %s201 = sphi 0, %s199
      %s202 = sphi 0, %s201
      %s216 = sphi 0, %s202
      %s220 = sphi 0, %s220
      %s222 = sphi 0, %s220
      %s223 = sphi 0, %s222
      %s237 = sphi 0, %s223
      %s241 = sphi 0, %s241
      %s243 = sphi 0, %s241
      %s244 = sphi 0, %s243
      %s258 = sphi 0, %s244
      %s262 = sphi 0, %s262
      %s264 = sphi 0, %s262
      %s265 = sphi 0, %s264
      %s279 = sphi 0, %s265
      %s283 = sphi 0, %s283
      %s285 = sphi 0, %s283
      %s286 = sphi 0, %s285
      %s300 = sphi 0, %s286
      %s308 = sphi 0, %s310
      %s311 = sphi 0, %s308
      %s312 = sphi 0, %s311
      %s328 = sphi 0, %s312
    $region4: #{tpu_custom_call.1} parent=1 // loop_header_branch
      %28 = sbr.rel (%p26) target = $region8
    $region5: #{tpu_custom_call.1} parent=1 // loop_body
      %s30 = ssub.s32 %s25, 1
      %s31 = ssub.s32 %s25, 2
      %s38 = sadd.s32 1, %s33
      %p39 = scmp.ge.s32.totalorder %s38, 1
      %s40 = scalar_select %p39, 0, %s38
      %s41 = sadd.s32 1, %s32
      %s42 = scalar_select %p39, %s41, %s32
      %p43 = scmp.ge.s32.totalorder %s42, 2
      %s44 = scalar_select %p43, 0, %s42
      %s45 = ssub.s32 %s32, %s44
      %s46 = ssub.s32 %s33, %s40
      %s47 = sor.u32 %s45, %s46
      %p48 = scmp.eq.s32.totalorder %s47, 0
      %s50 = sadd.s32 %s49, 1
      %s51 = scalar_select %p48, %s49, %s50
      %p54 = pneg %p48
      %p55 = scmp.eq.s32.totalorder %s25, 1
      %p56 = por %p54, %p55
      %p57 = scmp.ne.s32.totalorder %s49, %s52
      %p58 = scmp.eq.s32.totalorder %s25, 0
      %p59 = por %p57, %p58
      %p60 = scmp.ne.s32.totalorder %s49, %s52
      %p61 = scmp.eq.s32.totalorder %s30, 1
      %p62 = por %p60, %p61
      %p63 = scmp.ne.s32.totalorder %s52, %s53
      %p64 = scmp.eq.s32.totalorder %s30, 0
      %p65 = por %p63, %p64
      %p66 = scmp.ne.s32.totalorder %s52, %s53
      %p67 = scmp.eq.s32.totalorder %s31, 1
      %p68 = por %p66, %p67
      %p70 = scmp.ne.s32.totalorder %s53, %s69
      %p71 = scmp.eq.s32.totalorder %s31, 0
      %p72 = por %p70, %p71
      %s74 = sadd.s32 %s73, 1
      %p77 = scmp.eq.s32.totalorder %s25, 1
      %p78 = scmp.ne.s32.totalorder %s73, %s75
      %p79 = scmp.eq.s32.totalorder %s25, 0
      %p80 = por %p78, %p79
      %p81 = scmp.ne.s32.totalorder %s73, %s75
      %p82 = scmp.eq.s32.totalorder %s30, 1
      %p83 = por %p81, %p82
      %p84 = scmp.ne.s32.totalorder %s75, %s76
      %p85 = scmp.eq.s32.totalorder %s30, 0
      %p86 = por %p84, %p85
      %p87 = scmp.ne.s32.totalorder %s75, %s76
      %p88 = scmp.eq.s32.totalorder %s31, 1
      %p89 = por %p87, %p88
      %p91 = scmp.ne.s32.totalorder %s76, %s90
      %p92 = scmp.eq.s32.totalorder %s31, 0
      %p93 = por %p91, %p92
      %s95 = sadd.s32 %s94, 1
      %p98 = scmp.eq.s32.totalorder %s25, 1
      %p99 = scmp.ne.s32.totalorder %s94, %s96
      %p100 = scmp.eq.s32.totalorder %s25, 0
      %p101 = por %p99, %p100
      %p102 = scmp.ne.s32.totalorder %s94, %s96
      %p103 = scmp.eq.s32.totalorder %s30, 1
      %p104 = por %p102, %p103
      %p105 = scmp.ne.s32.totalorder %s96, %s97
      %p106 = scmp.eq.s32.totalorder %s30, 0
      %p107 = por %p105, %p106
      %p108 = scmp.ne.s32.totalorder %s96, %s97
      %p109 = scmp.eq.s32.totalorder %s31, 1
      %p110 = por %p108, %p109
      %p112 = scmp.ne.s32.totalorder %s97, %s111
      %p113 = scmp.eq.s32.totalorder %s31, 0
      %p114 = por %p112, %p113
      %s116 = sadd.s32 %s115, 1
      %p119 = scmp.eq.s32.totalorder %s25, 1
      %p120 = scmp.ne.s32.totalorder %s115, %s117
      %p121 = scmp.eq.s32.totalorder %s25, 0
      %p122 = por %p120, %p121
      %p123 = scmp.ne.s32.totalorder %s115, %s117
      %p124 = scmp.eq.s32.totalorder %s30, 1
      %p125 = por %p123, %p124
      %p126 = scmp.ne.s32.totalorder %s117, %s118
      %p127 = scmp.eq.s32.totalorder %s30, 0
      %p128 = por %p126, %p127
      %p129 = scmp.ne.s32.totalorder %s117, %s118
      %p130 = scmp.eq.s32.totalorder %s31, 1
      %p131 = por %p129, %p130
      %p133 = scmp.ne.s32.totalorder %s118, %s132
      %p134 = scmp.eq.s32.totalorder %s31, 0
      %p135 = por %p133, %p134
      %s137 = sadd.s32 %s136, 1
      %p140 = scmp.eq.s32.totalorder %s25, 1
      %p141 = scmp.ne.s32.totalorder %s136, %s138
      %p142 = scmp.eq.s32.totalorder %s25, 0
      %p143 = por %p141, %p142
      %p144 = scmp.ne.s32.totalorder %s136, %s138
      %p145 = scmp.eq.s32.totalorder %s30, 1
      %p146 = por %p144, %p145
      %p147 = scmp.ne.s32.totalorder %s138, %s139
      %p148 = scmp.eq.s32.totalorder %s30, 0
      %p149 = por %p147, %p148
      %p150 = scmp.ne.s32.totalorder %s138, %s139
      %p151 = scmp.eq.s32.totalorder %s31, 1
      %p152 = por %p150, %p151
      %p154 = scmp.ne.s32.totalorder %s139, %s153
      %p155 = scmp.eq.s32.totalorder %s31, 0
      %p156 = por %p154, %p155
      %s158 = sadd.s32 %s157, 1
      %p161 = scmp.eq.s32.totalorder %s25, 1
      %p162 = scmp.ne.s32.totalorder %s157, %s159
      %p163 = scmp.eq.s32.totalorder %s25, 0
      %p164 = por %p162, %p163
      %p165 = scmp.ne.s32.totalorder %s157, %s159
      %p166 = scmp.eq.s32.totalorder %s30, 1
      %p167 = por %p165, %p166
      %p168 = scmp.ne.s32.totalorder %s159, %s160
      %p169 = scmp.eq.s32.totalorder %s30, 0
      %p170 = por %p168, %p169
      %p171 = scmp.ne.s32.totalorder %s159, %s160
      %p172 = scmp.eq.s32.totalorder %s31, 1
      %p173 = por %p171, %p172
      %p175 = scmp.ne.s32.totalorder %s160, %s174
      %p176 = scmp.eq.s32.totalorder %s31, 0
      %p177 = por %p175, %p176
      %s179 = sadd.s32 %s178, 1
      %p182 = scmp.eq.s32.totalorder %s25, 1
      %p183 = scmp.ne.s32.totalorder %s178, %s180
      %p184 = scmp.eq.s32.totalorder %s25, 0
      %p185 = por %p183, %p184
      %p186 = scmp.ne.s32.totalorder %s178, %s180
      %p187 = scmp.eq.s32.totalorder %s30, 1
      %p188 = por %p186, %p187
      %p189 = scmp.ne.s32.totalorder %s180, %s181
      %p190 = scmp.eq.s32.totalorder %s30, 0
      %p191 = por %p189, %p190
      %p192 = scmp.ne.s32.totalorder %s180, %s181
      %p193 = scmp.eq.s32.totalorder %s31, 1
      %p194 = por %p192, %p193
      %p196 = scmp.ne.s32.totalorder %s181, %s195
      %p197 = scmp.eq.s32.totalorder %s31, 0
      %p198 = por %p196, %p197
      %s200 = sadd.s32 %s199, 1
      %p203 = scmp.eq.s32.totalorder %s25, 1
      %p204 = scmp.ne.s32.totalorder %s199, %s201
      %p205 = scmp.eq.s32.totalorder %s25, 0
      %p206 = por %p204, %p205
      %p207 = scmp.ne.s32.totalorder %s199, %s201
      %p208 = scmp.eq.s32.totalorder %s30, 1
      %p209 = por %p207, %p208
      %p210 = scmp.ne.s32.totalorder %s201, %s202
      %p211 = scmp.eq.s32.totalorder %s30, 0
      %p212 = por %p210, %p211
      %p213 = scmp.ne.s32.totalorder %s201, %s202
      %p214 = scmp.eq.s32.totalorder %s31, 1
      %p215 = por %p213, %p214
      %p217 = scmp.ne.s32.totalorder %s202, %s216
      %p218 = scmp.eq.s32.totalorder %s31, 0
      %p219 = por %p217, %p218
      %s221 = sadd.s32 %s220, 1
      %p224 = scmp.eq.s32.totalorder %s25, 1
      %p225 = scmp.ne.s32.totalorder %s220, %s222
      %p226 = scmp.eq.s32.totalorder %s25, 0
      %p227 = por %p225, %p226
      %p228 = scmp.ne.s32.totalorder %s220, %s222
      %p229 = scmp.eq.s32.totalorder %s30, 1
      %p230 = por %p228, %p229
      %p231 = scmp.ne.s32.totalorder %s222, %s223
      %p232 = scmp.eq.s32.totalorder %s30, 0
      %p233 = por %p231, %p232
      %p234 = scmp.ne.s32.totalorder %s222, %s223
      %p235 = scmp.eq.s32.totalorder %s31, 1
      %p236 = por %p234, %p235
      %p238 = scmp.ne.s32.totalorder %s223, %s237
      %p239 = scmp.eq.s32.totalorder %s31, 0
      %p240 = por %p238, %p239
      %s242 = sadd.s32 %s241, 1
      %p245 = scmp.eq.s32.totalorder %s25, 1
      %p246 = scmp.ne.s32.totalorder %s241, %s243
      %p247 = scmp.eq.s32.totalorder %s25, 0
      %p248 = por %p246, %p247
      %p249 = scmp.ne.s32.totalorder %s241, %s243
      %p250 = scmp.eq.s32.totalorder %s30, 1
      %p251 = por %p249, %p250
      %p252 = scmp.ne.s32.totalorder %s243, %s244
      %p253 = scmp.eq.s32.totalorder %s30, 0
      %p254 = por %p252, %p253
      %p255 = scmp.ne.s32.totalorder %s243, %s244
      %p256 = scmp.eq.s32.totalorder %s31, 1
      %p257 = por %p255, %p256
      %p259 = scmp.ne.s32.totalorder %s244, %s258
      %p260 = scmp.eq.s32.totalorder %s31, 0
      %p261 = por %p259, %p260
      %s263 = sadd.s32 %s262, 1
      %p266 = scmp.eq.s32.totalorder %s25, 1
      %p267 = scmp.ne.s32.totalorder %s262, %s264
      %p268 = scmp.eq.s32.totalorder %s25, 0
      %p269 = por %p267, %p268
      %p270 = scmp.ne.s32.totalorder %s262, %s264
      %p271 = scmp.eq.s32.totalorder %s30, 1
      %p272 = por %p270, %p271
      %p273 = scmp.ne.s32.totalorder %s264, %s265
      %p274 = scmp.eq.s32.totalorder %s30, 0
      %p275 = por %p273, %p274
      %p276 = scmp.ne.s32.totalorder %s264, %s265
      %p277 = scmp.eq.s32.totalorder %s31, 1
      %p278 = por %p276, %p277
      %p280 = scmp.ne.s32.totalorder %s265, %s279
      %p281 = scmp.eq.s32.totalorder %s31, 0
      %p282 = por %p280, %p281
      %s284 = sadd.s32 %s283, 1
      %p287 = scmp.eq.s32.totalorder %s25, 1
      %p288 = scmp.ne.s32.totalorder %s283, %s285
      %p289 = scmp.eq.s32.totalorder %s25, 0
      %p290 = por %p288, %p289
      %p291 = scmp.ne.s32.totalorder %s283, %s285
      %p292 = scmp.eq.s32.totalorder %s30, 1
      %p293 = por %p291, %p292
      %p294 = scmp.ne.s32.totalorder %s285, %s286
      %p295 = scmp.eq.s32.totalorder %s30, 0
      %p296 = por %p294, %p295
      %p297 = scmp.ne.s32.totalorder %s285, %s286
      %p298 = scmp.eq.s32.totalorder %s31, 1
      %p299 = por %p297, %p298
      %p301 = scmp.ne.s32.totalorder %s286, %s300
      %p302 = scmp.eq.s32.totalorder %s31, 0
      %p303 = por %p301, %p302
      %s304 = ssub.s32 %s32, %s44
      %s305 = ssub.s32 %s33, %s40
      %s306 = sor.u32 %s304, %s305
      %p307 = scmp.eq.s32.totalorder %s306, 0
      %s309 = sadd.s32 %s308, 1
      %s310 = scalar_select %p307, %s308, %s309
      %p313 = pneg %p307
      %p314 = scmp.eq.s32.totalorder %s25, 1
      %p315 = por %p313, %p314
      %p316 = scmp.ne.s32.totalorder %s308, %s311
      %p317 = scmp.eq.s32.totalorder %s25, 0
      %p318 = por %p316, %p317
      %p319 = scmp.ne.s32.totalorder %s308, %s311
      %p320 = scmp.eq.s32.totalorder %s30, 1
      %p321 = por %p319, %p320
      %p322 = scmp.ne.s32.totalorder %s311, %s312
      %p323 = scmp.eq.s32.totalorder %s30, 0
      %p324 = por %p322, %p323
      %p325 = scmp.ne.s32.totalorder %s311, %s312
      %p326 = scmp.eq.s32.totalorder %s31, 1
      %p327 = por %p325, %p326
      %p329 = scmp.ne.s32.totalorder %s312, %s328
      %p330 = scmp.eq.s32.totalorder %s31, 0
      %p331 = por %p329, %p330
      %p332 = scmp.le.s32.totalorder 1, %s25
      %p333 = scmp.lt.s32.totalorder %s25, 3
      %p334 = pnand %p332, %p333
      %p335 = pneg %p334
      // Predicated region
      $region9: #{tpu_custom_call.1} parent=5 // pred_check
        _
      $region10: #{tpu_custom_call.1} parent=5 // pred_check_branch
        %337 = sbr.rel (%p334) target = $region12
      $region11: #{tpu_custom_call.1} parent=5 // pred_region
        %s338 = ssub.s32 %s25, 1
        // Predicated region
        $region13: #{tpu_custom_call.1} parent=11 // pred_check
          %p339 = pneg %p86
        $region14: #{tpu_custom_call.1} parent=11 // pred_check_branch
          %341 = sbr.rel (%p339) target = $region16
        $region15: #{tpu_custom_call.1} parent=11 // pred_region
          _
        $region16: #{tpu_custom_call.1} parent=11 // pred_fallthru
          _
        // Predicated region
        $region17: #{tpu_custom_call.1} parent=11 // pred_check
          %p342 = pneg %p107
        $region18: #{tpu_custom_call.1} parent=11 // pred_check_branch
          %344 = sbr.rel (%p342) target = $region20
        $region19: #{tpu_custom_call.1} parent=11 // pred_region
          _
        $region20: #{tpu_custom_call.1} parent=11 // pred_fallthru
          _
        // Predicated region
        $region21: #{tpu_custom_call.1} parent=11 // pred_check
          %p345 = pneg %p128
        $region22: #{tpu_custom_call.1} parent=11 // pred_check_branch
          %347 = sbr.rel (%p345) target = $region24
        $region23: #{tpu_custom_call.1} parent=11 // pred_region
          _
        $region24: #{tpu_custom_call.1} parent=11 // pred_fallthru
          _
        // Predicated region
        $region25: #{tpu_custom_call.1} parent=11 // pred_check
          %p348 = pneg %p149
        $region26: #{tpu_custom_call.1} parent=11 // pred_check_branch
          %350 = sbr.rel (%p348) target = $region28
        $region27: #{tpu_custom_call.1} parent=11 // pred_region
          _
        $region28: #{tpu_custom_call.1} parent=11 // pred_fallthru
          _
        // Predicated region
        $region29: #{tpu_custom_call.1} parent=11 // pred_check
          %p351 = pneg %p170
        $region30: #{tpu_custom_call.1} parent=11 // pred_check_branch
          %353 = sbr.rel (%p351) target = $region32
        $region31: #{tpu_custom_call.1} parent=11 // pred_region
          _
        $region32: #{tpu_custom_call.1} parent=11 // pred_fallthru
          _
        // Predicated region
        $region33: #{tpu_custom_call.1} parent=11 // pred_check
          %p354 = pneg %p191
        $region34: #{tpu_custom_call.1} parent=11 // pred_check_branch
          %356 = sbr.rel (%p354) target = $region36
        $region35: #{tpu_custom_call.1} parent=11 // pred_region
          _
        $region36: #{tpu_custom_call.1} parent=11 // pred_fallthru
          _
        // Predicated region
        $region37: #{tpu_custom_call.1} parent=11 // pred_check
          %p357 = pneg %p212
        $region38: #{tpu_custom_call.1} parent=11 // pred_check_branch
          %359 = sbr.rel (%p357) target = $region40
        $region39: #{tpu_custom_call.1} parent=11 // pred_region
          _
        $region40: #{tpu_custom_call.1} parent=11 // pred_fallthru
          _
        // Predicated region
        $region41: #{tpu_custom_call.1} parent=11 // pred_check
          %p360 = pneg %p233
        $region42: #{tpu_custom_call.1} parent=11 // pred_check_branch
          %362 = sbr.rel (%p360) target = $region44
        $region43: #{tpu_custom_call.1} parent=11 // pred_region
          _
        $region44: #{tpu_custom_call.1} parent=11 // pred_fallthru
          _
        // Predicated region
        $region45: #{tpu_custom_call.1} parent=11 // pred_check
          %p363 = pneg %p254
        $region46: #{tpu_custom_call.1} parent=11 // pred_check_branch
          %365 = sbr.rel (%p363) target = $region48
        $region47: #{tpu_custom_call.1} parent=11 // pred_region
          _
        $region48: #{tpu_custom_call.1} parent=11 // pred_fallthru
          _
        // Predicated region
        $region49: #{tpu_custom_call.1} parent=11 // pred_check
          %p366 = pneg %p275
        $region50: #{tpu_custom_call.1} parent=11 // pred_check_branch
          %368 = sbr.rel (%p366) target = $region52
        $region51: #{tpu_custom_call.1} parent=11 // pred_region
          _
        $region52: #{tpu_custom_call.1} parent=11 // pred_fallthru
          _
        // Predicated region
        $region53: #{tpu_custom_call.1} parent=11 // pred_check
          %p369 = pneg %p296
        $region54: #{tpu_custom_call.1} parent=11 // pred_check_branch
          %371 = sbr.rel (%p369) target = $region56
        $region55: #{tpu_custom_call.1} parent=11 // pred_region
          _
        $region56: #{tpu_custom_call.1} parent=11 // pred_fallthru
          _
      $region12: #{tpu_custom_call.1} parent=5 // pred_fallthru
        _
      %p372 = scmp.lt.s32.totalorder %s25, 2
      // Predicated region
      $region57: #{tpu_custom_call.1} parent=5 // pred_check
        %p373 = pneg %p372
      $region58: #{tpu_custom_call.1} parent=5 // pred_check_branch
        %375 = sbr.rel (%p373) target = $region60
      $region59: #{tpu_custom_call.1} parent=5 // pred_region
        // Predicated region
        $region61: #{tpu_custom_call.1} parent=59 // pred_check
          %p376 = pneg %p59
        $region62: #{tpu_custom_call.1} parent=59 // pred_check_branch
          %378 = sbr.rel (%p376) target = $region64
        $region63: #{tpu_custom_call.1} parent=59 // pred_region
          %s379 = sand.u32 %s49, 1
          %s380 = scalar_lea.sflag [#allocation4], %s379
          %s381 = sand.u32 %s49, 1
          %s382 = smul.addr %s381, 64
          %s383 = scalar_lea.vmem [#allocation3], %s382
          %s385 = ssub.s32 1024, 1024
          %386 = vsyncadd %s380, %s385
          %s387 = smul.addr %s32, 8
          %s388 = sadd.s32 %s33, %s387
          %s389 = smul.addr %s388, 128
          %s390 = scalar_lea.hbm %s0, %s389
          %s391 = sshll.u32 %s383, 4
          %s392 = int_to_ptr.vmem [resolvable:$true] %s391
          %397 = dma.hbm_to_vmem [thread:$0]  %s390, 1024, %s392, %s380, 128, 128, 8
        $region64: #{tpu_custom_call.1} parent=59 // pred_fallthru
          _
      $region60: #{tpu_custom_call.1} parent=5 // pred_fallthru
        _
      %p398 = scmp.le.s32.totalorder 1, %s25
      %p399 = scmp.lt.s32.totalorder %s25, 3
      %p400 = pnand %p398, %p399
      %p401 = pneg %p400
      // Predicated region
      $region65: #{tpu_custom_call.1} parent=5 // pred_check
        _
      $region66: #{tpu_custom_call.1} parent=5 // pred_check_branch
        %403 = sbr.rel (%p400) target = $region68
      $region67: #{tpu_custom_call.1} parent=5 // pred_region
        %s404 = ssub.s32 %s25, 1
        %s405 = sand.u32 %s52, 1
        %s406 = scalar_lea.sflag [#allocation4], %s405
        %s407 = sand.u32 %s52, 1
        %s408 = smul.addr %s407, 64
        %s409 = scalar_lea.vmem [#allocation3], %s408
        // Predicated region
        $region69: #{tpu_custom_call.1} parent=67 // pred_check
          %p410 = pneg %p65
        $region70: #{tpu_custom_call.1} parent=67 // pred_check_branch
          %412 = sbr.rel (%p410) target = $region72
        $region71: #{tpu_custom_call.1} parent=67 // pred_region
          %413 = dma.done %s406, 1024
        $region72: #{tpu_custom_call.1} parent=67 // pred_fallthru
          _
        %s414 = sand.u32 %s52, 1
        %s415 = scalar_lea.sflag [#allocation4], %s414
        %s416 = sand.u32 %s52, 1
        %s417 = smul.addr %s416, 64
        %s418 = scalar_lea.vmem [#allocation3], %s417
        %p419 = pneg %p65
        %p420 = pneg %p62
        %p421 = pneg %p86
        %p422 = pneg %p83
        %p423 = pneg %p107
        %p424 = pneg %p104
        %p425 = pneg %p128
        %p426 = pneg %p125
        %p427 = pneg %p149
        %p428 = pneg %p146
        %p429 = pneg %p170
        %p430 = pneg %p167
        %p431 = pneg %p191
        %p432 = pneg %p188
        %p433 = pneg %p212
        %p434 = pneg %p209
        %p435 = pneg %p233
        %p436 = pneg %p230
        %p437 = pneg %p254
        %p438 = pneg %p251
        %p439 = pneg %p275
        %p440 = pneg %p272
        %p441 = pneg %p296
        %p442 = pneg %p293
        %p443 = pneg %p324
        %p444 = pneg %p321
        %s445 = sand.u32 %s311, 1
        %s446 = scalar_lea.sflag [#allocation5], %s445
        %s447 = sand.u32 %s311, 1
        %s448 = smul.addr %s447, 64
        %s449 = scalar_lea.vmem [#allocation6], %s448
        %v450 = vld [vmem:[%s409] sm:$0xff]
        %v451 = vld [vmem:[%s409 + $0x8] sm:$0xff]
        %v452 = vld [vmem:[%s409 + $0x10] sm:$0xff]
        %v453 = vld [vmem:[%s409 + $0x18] sm:$0xff]
        %v454 = vld [vmem:[%s409 + $0x20] sm:$0xff]
        %v455 = vld [vmem:[%s409 + $0x28] sm:$0xff]
        %v456 = vld [vmem:[%s409 + $0x30] sm:$0xff]
        %v457 = vld [vmem:[%s409 + $0x38] sm:$0xff]
        %vm458 = vcmask 261120
        %v459 = vsel %vm458, %v450, 0.0
        %460 = vadd.xlane.f32.xlu0 %v459
        %v461 = vpop.xlane.xlu0 %460
        %v462 = vsel %vm458, %v451, 0.0
        %463 = vadd.xlane.f32.xlu0 %v462
        %v464 = vpop.xlane.xlu0 %463
        %v465 = vsel %vm458, %v452, 0.0
        %466 = vadd.xlane.f32.xlu0 %v465
        %v467 = vpop.xlane.xlu0 %466
        %v468 = vsel %vm458, %v453, 0.0
        %469 = vadd.xlane.f32.xlu0 %v468
        %v470 = vpop.xlane.xlu0 %469
        %v471 = vsel %vm458, %v454, 0.0
        %472 = vadd.xlane.f32.xlu0 %v471
        %v473 = vpop.xlane.xlu0 %472
        %v474 = vsel %vm458, %v455, 0.0
        %475 = vadd.xlane.f32.xlu0 %v474
        %v476 = vpop.xlane.xlu0 %475
        %v477 = vsel %vm458, %v456, 0.0
        %478 = vadd.xlane.f32.xlu0 %v477
        %v479 = vpop.xlane.xlu0 %478
        %v480 = vsel %vm458, %v457, 0.0
        %481 = vadd.xlane.f32.xlu0 %v480
        %v482 = vpop.xlane.xlu0 %481
        %v483 = vrcp.pop 32.0
        %v484 = vmul.f32 %v461, %v483
        %v485 = vmul.f32 %v464, %v483
        %v486 = vmul.f32 %v467, %v483
        %v487 = vmul.f32 %v470, %v483
        %v488 = vmul.f32 %v473, %v483
        %v489 = vmul.f32 %v476, %v483
        %v490 = vmul.f32 %v479, %v483
        %v491 = vmul.f32 %v482, %v483
        %v492 = vsub.f32 %v450, %v484
        %v493 = vsub.f32 %v451, %v485
        %v494 = vsub.f32 %v452, %v486
        %v495 = vsub.f32 %v453, %v487
        %v496 = vsub.f32 %v454, %v488
        %v497 = vsub.f32 %v455, %v489
        %v498 = vsub.f32 %v456, %v490
        %v499 = vsub.f32 %v457, %v491
        %v500 = vmul.f32 %v492, %v492
        %v501 = vmul.f32 %v493, %v493
        %v502 = vmul.f32 %v494, %v494
        %v503 = vmul.f32 %v495, %v495
        %v504 = vmul.f32 %v496, %v496
        %v505 = vmul.f32 %v497, %v497
        %v506 = vmul.f32 %v498, %v498
        %v507 = vmul.f32 %v499, %v499
        %v508 = vsel %vm458, %v500, 0.0
        %509 = vadd.xlane.f32.xlu0 %v508
        %v510 = vpop.xlane.xlu0 %509
        %v511 = vsel %vm458, %v501, 0.0
        %512 = vadd.xlane.f32.xlu0 %v511
        %v513 = vpop.xlane.xlu0 %512
        %v514 = vsel %vm458, %v502, 0.0
        %515 = vadd.xlane.f32.xlu0 %v514
        %v516 = vpop.xlane.xlu0 %515
        %v517 = vsel %vm458, %v503, 0.0
        %518 = vadd.xlane.f32.xlu0 %v517
        %v519 = vpop.xlane.xlu0 %518
        %v520 = vsel %vm458, %v504, 0.0
        %521 = vadd.xlane.f32.xlu0 %v520
        %v522 = vpop.xlane.xlu0 %521
        %v523 = vsel %vm458, %v505, 0.0
        %524 = vadd.xlane.f32.xlu0 %v523
        %v525 = vpop.xlane.xlu0 %524
        %v526 = vsel %vm458, %v506, 0.0
        %527 = vadd.xlane.f32.xlu0 %v526
        %v528 = vpop.xlane.xlu0 %527
        %v529 = vsel %vm458, %v507, 0.0
        %530 = vadd.xlane.f32.xlu0 %v529
        %v531 = vpop.xlane.xlu0 %530
        %v532 = vmul.f32 %v510, %v483
        %v533 = vmul.f32 %v513, %v483
        %v534 = vmul.f32 %v516, %v483
        %v535 = vmul.f32 %v519, %v483
        %v536 = vmul.f32 %v522, %v483
        %v537 = vmul.f32 %v525, %v483
        %v538 = vmul.f32 %v528, %v483
        %v539 = vmul.f32 %v531, %v483
        %v540 = vadd.f32 %v532, 1e-05
        %v541 = vadd.f32 %v533, 1e-05
        %v542 = vadd.f32 %v534, 1e-05
        %v543 = vadd.f32 %v535, 1e-05
        %v544 = vadd.f32 %v536, 1e-05
        %v545 = vadd.f32 %v537, 1e-05
        %v546 = vadd.f32 %v538, 1e-05
        %v547 = vadd.f32 %v539, 1e-05
        %v548 = vrsqrt.pop %v540
        %v549 = vrsqrt.pop %v541
        %v550 = vrsqrt.pop %v542
        %v551 = vrsqrt.pop %v543
        %v552 = vrsqrt.pop %v544
        %v553 = vrsqrt.pop %v545
        %v554 = vrsqrt.pop %v546
        %v555 = vrsqrt.pop %v547
        %v556 = vmul.f32 %v492, %v548
        %v557 = vmul.f32 %v493, %v549
        %v558 = vmul.f32 %v494, %v550
        %v559 = vmul.f32 %v495, %v551
        %v560 = vmul.f32 %v496, %v552
        %v561 = vmul.f32 %v497, %v553
        %v562 = vmul.f32 %v498, %v554
        %v563 = vmul.f32 %v499, %v555
        %v564 = vld [vmem:[%s1] sm:$0x1]
        %v566 = vlaneseq
        %v567 = vshrl.u32 %v566, 7
        %v568 = vsub.s32 0, %v567
        %v569 = vrot.slane %v564, %v568
        %v571 = vmul.f32 %v556, %v569
        %v572 = vmul.f32 %v557, %v569
        %v573 = vmul.f32 %v558, %v569
        %v574 = vmul.f32 %v559, %v569
        %v575 = vmul.f32 %v560, %v569
        %v576 = vmul.f32 %v561, %v569
        %v577 = vmul.f32 %v562, %v569
        %v578 = vmul.f32 %v563, %v569
        %v579 = vld [vmem:[%s2] sm:$0x1]
        %v581 = vlaneseq
        %v582 = vshrl.u32 %v581, 7
        %v583 = vsub.s32 0, %v582
        %v584 = vrot.slane %v579, %v583
        %v586 = vadd.f32 %v571, %v584
        %v587 = vadd.f32 %v572, %v584
        %v588 = vadd.f32 %v573, %v584
        %v589 = vadd.f32 %v574, %v584
        %v590 = vadd.f32 %v575, %v584
        %v591 = vadd.f32 %v576, %v584
        %v592 = vadd.f32 %v577, %v584
        %v593 = vadd.f32 %v578, %v584
        %v594 = vsel %vm458, %v586, 0.0
        %v595 = vsel %vm458, %v587, 0.0
        %v596 = vadd.f32 %v594, %v595
        %v597 = vsel %vm458, %v588, 0.0
        %v598 = vadd.f32 %v596, %v597
        %v599 = vsel %vm458, %v589, 0.0
        %v600 = vadd.f32 %v598, %v599
        %v601 = vsel %vm458, %v590, 0.0
        %v602 = vadd.f32 %v600, %v601
        %v603 = vsel %vm458, %v591, 0.0
        %v604 = vadd.f32 %v602, %v603
        %v605 = vsel %vm458, %v592, 0.0
        %v606 = vadd.f32 %v604, %v605
        %v607 = vsel %vm458, %v593, 0.0
        %v608 = vadd.f32 %v606, %v607
        %v609 = vrcp.pop 8.0
        %v610 = vmul.f32 %v608, %v609
        %v611 = vld [vmem:[%s3] sm:$0xff]
        %v612 = vld [vmem:[%s3 + $0x8] sm:$0xff]
        %v613 = vld [vmem:[%s3 + $0x10] sm:$0xff]
        %v614 = vld [vmem:[%s3 + $0x18] sm:$0xff]
        %v615 = vld [vmem:[%s4] sm:$0x1]
        %v617 = vlaneseq
        %v618 = vshrl.u32 %v617, 7
        %v619 = vsub.s32 0, %v618
        %v620 = vrot.slane %v615, %v619
        %v623 = vsel %vm458, %v610, 0
        %625 = vmatprep.subr.mxu0 0.0
        %626 = vmatpush1.msra.mxu0 %v611
        %627 = vmatprep.subr.mxu0 0.0
        %628 = vmatpush1.msra.mxu0 %v612
        %629 = vmatprep.subr.mxu0 0.0
        %630 = vmatpush1.msra.mxu0 %v613
        %631 = vmatprep.subr.mxu0 0.0
        %632 = vmatpush1.msra.mxu0 %v614
        %633 = vmatprep.subr.mxu0 0.0
        %634 = vmatpush1.msra.mxu0 0.0
        %635 = vmatprep.subr.mxu0 0.0
        %636 = vmatpush1.msra.mxu0 0.0
        %637 = vmatprep.subr.mxu0 0.0
        %638 = vmatpush1.msra.mxu0 0.0
        %639 = vmatprep.subr.mxu0 0.0
        %640 = vmatpush1.msra.mxu0 0.0
        %641 = vmatprep.subr.mxu0 0.0
        %642 = vmatpush1.msra.mxu0 0.0
        %643 = vmatprep.subr.mxu0 0.0
        %644 = vmatpush1.msra.mxu0 0.0
        %645 = vmatprep.subr.mxu0 0.0
        %646 = vmatpush1.msra.mxu0 0.0
        %647 = vmatprep.subr.mxu0 0.0
        %648 = vmatpush1.msra.mxu0 0.0
        %649 = vmatprep.subr.mxu0 0.0
        %650 = vmatpush1.msra.mxu0 0.0
        %651 = vmatprep.subr.mxu0 0.0
        %652 = vmatpush1.msra.mxu0 0.0
        %653 = vmatprep.subr.mxu0 0.0
        %654 = vmatpush1.msra.mxu0 0.0
        %655 = vmatprep.subr.mxu0 0.0
        %656 = vmatpush1.msra.mxu0 0.0
        %657 = vmatprep.subr.mxu0 0.0
        %658 = vmatpush1.msra.mxu0 0.0
        %659 = vmatprep.subr.mxu0 0.0
        %660 = vmatpush1.msra.mxu0 0.0
        %661 = vmatprep.subr.mxu0 0.0
        %662 = vmatpush1.msra.mxu0 0.0
        %663 = vmatprep.subr.mxu0 0.0
        %664 = vmatpush1.msra.mxu0 0.0
        %665 = vmatprep.subr.mxu0 0.0
        %666 = vmatpush1.msra.mxu0 0.0
        %667 = vmatprep.subr.mxu0 0.0
        %668 = vmatpush1.msra.mxu0 0.0
        %669 = vmatprep.subr.mxu0 0.0
        %670 = vmatpush1.msra.mxu0 0.0
        %671 = vmatprep.subr.mxu0 0.0
        %672 = vmatpush1.msra.mxu0 0.0
        %673 = vmatprep.subr.mxu0 0.0
        %674 = vmatpush1.msra.mxu0 0.0
        %675 = vmatprep.subr.mxu0 0.0
        %676 = vmatpush1.msra.mxu0 0.0
        %677 = vmatprep.subr.mxu0 0.0
        %678 = vmatpush1.msra.mxu0 0.0
        %679 = vmatprep.subr.mxu0 0.0
        %680 = vmatpush1.msra.mxu0 0.0
        %681 = vmatprep.subr.mxu0 0.0
        %682 = vmatpush1.msra.mxu0 0.0
        %683 = vmatprep.subr.mxu0 0.0
        %684 = vmatpush1.msra.mxu0 0.0
        %685 = vmatprep.subr.mxu0 0.0
        %686 = vmatpush1.msra.mxu0 0.0
        %687 = vmatprep.subr.mxu0 0.0
        %688 = vmatpush1.msra.mxu0 0.0
        %689 = vmatprep.mubr.f32.mxu0 0.0
        %690 = vmatmul.mubr.f32.gmra.mrb[0].mxu0 %v623
        %v691 = vpop.f32.mrb[0].mxu0
        %v692 = vadd.f32 %v620, %v691
        %v693 = vpop.f32.mrb[0].mxu0
        %694 = vdwg.mxu0
        %v695 = vmul.f32 %v692, 0.5
        %v696 = vmul.f32 %v692, 0.70710677
        %v697 = verf.f32.pop %v696
        %v698 = vadd.f32 %v697, 1.0
        %v699 = vmul.f32 %v695, %v698
        %v700 = vld [vmem:[%s5] sm:$0xff]
        %v701 = vld [vmem:[%s5 + $0x8] sm:$0xff]
        %v702 = vld [vmem:[%s5 + $0x10] sm:$0xff]
        %v703 = vld [vmem:[%s5 + $0x18] sm:$0xff]
        %v704 = vld [vmem:[%s6] sm:$0x1]
        %v706 = vlaneseq
        %v707 = vshrl.u32 %v706, 7
        %v708 = vsub.s32 0, %v707
        %v709 = vrot.slane %v704, %v708
        %v712 = vsel %vm458, %v586, 0
        %v715 = vsel %vm458, %v587, 0
        %v718 = vsel %vm458, %v588, 0
        %v721 = vsel %vm458, %v589, 0
        %v724 = vsel %vm458, %v590, 0
        %v727 = vsel %vm458, %v591, 0
        %v730 = vsel %vm458, %v592, 0
        %v733 = vsel %vm458, %v593, 0
        %735 = vmatprep.subr.mxu0 0.0
        %736 = vmatpush1.msra.mxu0 %v700
        %737 = vmatprep.subr.mxu0 0.0
        %738 = vmatpush1.msra.mxu0 %v701
        %739 = vmatprep.subr.mxu0 0.0
        %740 = vmatpush1.msra.mxu0 %v702
        %741 = vmatprep.subr.mxu0 0.0
        %742 = vmatpush1.msra.mxu0 %v703
        %743 = vmatprep.subr.mxu0 0.0
        %744 = vmatpush1.msra.mxu0 0.0
        %745 = vmatprep.subr.mxu0 0.0
        %746 = vmatpush1.msra.mxu0 0.0
        %747 = vmatprep.subr.mxu0 0.0
        %748 = vmatpush1.msra.mxu0 0.0
        %749 = vmatprep.subr.mxu0 0.0
        %750 = vmatpush1.msra.mxu0 0.0
        %751 = vmatprep.subr.mxu0 0.0
        %752 = vmatpush1.msra.mxu0 0.0
        %753 = vmatprep.subr.mxu0 0.0
        %754 = vmatpush1.msra.mxu0 0.0
        %755 = vmatprep.subr.mxu0 0.0
        %756 = vmatpush1.msra.mxu0 0.0
        %757 = vmatprep.subr.mxu0 0.0
        %758 = vmatpush1.msra.mxu0 0.0
        %759 = vmatprep.subr.mxu0 0.0
        %760 = vmatpush1.msra.mxu0 0.0
        %761 = vmatprep.subr.mxu0 0.0
        %762 = vmatpush1.msra.mxu0 0.0
        %763 = vmatprep.subr.mxu0 0.0
        %764 = vmatpush1.msra.mxu0 0.0
        %765 = vmatprep.subr.mxu0 0.0
        %766 = vmatpush1.msra.mxu0 0.0
        %767 = vmatprep.subr.mxu0 0.0
        %768 = vmatpush1.msra.mxu0 0.0
        %769 = vmatprep.subr.mxu0 0.0
        %770 = vmatpush1.msra.mxu0 0.0
        %771 = vmatprep.subr.mxu0 0.0
        %772 = vmatpush1.msra.mxu0 0.0
        %773 = vmatprep.subr.mxu0 0.0
        %774 = vmatpush1.msra.mxu0 0.0
        %775 = vmatprep.subr.mxu0 0.0
        %776 = vmatpush1.msra.mxu0 0.0
        %777 = vmatprep.subr.mxu0 0.0
        %778 = vmatpush1.msra.mxu0 0.0
        %779 = vmatprep.subr.mxu0 0.0
        %780 = vmatpush1.msra.mxu0 0.0
        %781 = vmatprep.subr.mxu0 0.0
        %782 = vmatpush1.msra.mxu0 0.0
        %783 = vmatprep.subr.mxu0 0.0
        %784 = vmatpush1.msra.mxu0 0.0
        %785 = vmatprep.subr.mxu0 0.0
        %786 = vmatpush1.msra.mxu0 0.0
        %787 = vmatprep.subr.mxu0 0.0
        %788 = vmatpush1.msra.mxu0 0.0
        %789 = vmatprep.subr.mxu0 0.0
        %790 = vmatpush1.msra.mxu0 0.0
        %791 = vmatprep.subr.mxu0 0.0
        %792 = vmatpush1.msra.mxu0 0.0
        %793 = vmatprep.subr.mxu0 0.0
        %794 = vmatpush1.msra.mxu0 0.0
        %795 = vmatprep.subr.mxu0 0.0
        %796 = vmatpush1.msra.mxu0 0.0
        %797 = vmatprep.subr.mxu0 0.0
        %798 = vmatpush1.msra.mxu0 0.0
        %799 = vmatprep.mubr.f32.mxu0 0.0
        %800 = vmatmul.mubr.f32.gmra.mrb[0].mxu0 %v712
        %v801 = vpop.f32.mrb[0].mxu0
        %v802 = vadd.f32 %v709, %v801
        %v803 = vpop.f32.mrb[0].mxu0
        %804 = vmatprep.mubr.f32.mxu0 0.0
        %805 = vmatmul.mubr.f32.gmra.mrb[0].mxu0 %v715
        %v806 = vpop.f32.mrb[0].mxu0
        %v807 = vadd.f32 %v709, %v806
        %v808 = vpop.f32.mrb[0].mxu0
        %809 = vmatprep.mubr.f32.mxu0 0.0
        %810 = vmatmul.mubr.f32.gmra.mrb[0].mxu0 %v718
        %v811 = vpop.f32.mrb[0].mxu0
        %v812 = vadd.f32 %v709, %v811
        %v813 = vpop.f32.mrb[0].mxu0
        %814 = vmatprep.mubr.f32.mxu0 0.0
        %815 = vmatmul.mubr.f32.gmra.mrb[0].mxu0 %v721
        %v816 = vpop.f32.mrb[0].mxu0
        %v817 = vadd.f32 %v709, %v816
        %v818 = vpop.f32.mrb[0].mxu0
        %819 = vmatprep.mubr.f32.mxu0 0.0
        %820 = vmatmul.mubr.f32.gmra.mrb[0].mxu0 %v724
        %v821 = vpop.f32.mrb[0].mxu0
        %v822 = vadd.f32 %v709, %v821
        %v823 = vpop.f32.mrb[0].mxu0
        %824 = vmatprep.mubr.f32.mxu0 0.0
        %825 = vmatmul.mubr.f32.gmra.mrb[0].mxu0 %v727
        %v826 = vpop.f32.mrb[0].mxu0
        %v827 = vadd.f32 %v709, %v826
        %v828 = vpop.f32.mrb[0].mxu0
        %829 = vmatprep.mubr.f32.mxu0 0.0
        %830 = vmatmul.mubr.f32.gmra.mrb[0].mxu0 %v730
        %v831 = vpop.f32.mrb[0].mxu0
        %v832 = vadd.f32 %v709, %v831
        %v833 = vpop.f32.mrb[0].mxu0
        %834 = vmatprep.mubr.f32.mxu0 0.0
        %835 = vmatmul.mubr.f32.gmra.mrb[0].mxu0 %v733
        %v836 = vpop.f32.mrb[0].mxu0
        %v837 = vadd.f32 %v709, %v836
        %v838 = vpop.f32.mrb[0].mxu0
        %839 = vdwg.mxu0
        %v840 = vmul.f32 %v802, 0.5
        %v841 = vmul.f32 %v807, 0.5
        %v842 = vmul.f32 %v812, 0.5
        %v843 = vmul.f32 %v817, 0.5
        %v844 = vmul.f32 %v822, 0.5
        %v845 = vmul.f32 %v827, 0.5
        %v846 = vmul.f32 %v832, 0.5
        %v847 = vmul.f32 %v837, 0.5
        %v848 = vmul.f32 %v802, 0.70710677
        %v849 = vmul.f32 %v807, 0.70710677
        %v850 = vmul.f32 %v812, 0.70710677
        %v851 = vmul.f32 %v817, 0.70710677
        %v852 = vmul.f32 %v822, 0.70710677
        %v853 = vmul.f32 %v827, 0.70710677
        %v854 = vmul.f32 %v832, 0.70710677
        %v855 = vmul.f32 %v837, 0.70710677
        %v856 = verf.f32.pop %v848
        %v857 = verf.f32.pop %v849
        %v858 = verf.f32.pop %v850
        %v859 = verf.f32.pop %v851
        %v860 = verf.f32.pop %v852
        %v861 = verf.f32.pop %v853
        %v862 = verf.f32.pop %v854
        %v863 = verf.f32.pop %v855
        %v864 = vadd.f32 %v856, 1.0
        %v865 = vadd.f32 %v857, 1.0
        %v866 = vadd.f32 %v858, 1.0
        %v867 = vadd.f32 %v859, 1.0
        %v868 = vadd.f32 %v860, 1.0
        %v869 = vadd.f32 %v861, 1.0
        %v870 = vadd.f32 %v862, 1.0
        %v871 = vadd.f32 %v863, 1.0
        %v872 = vmul.f32 %v840, %v864
        %v873 = vmul.f32 %v841, %v865
        %v874 = vmul.f32 %v842, %v866
        %v875 = vmul.f32 %v843, %v867
        %v876 = vmul.f32 %v844, %v868
        %v877 = vmul.f32 %v845, %v869
        %v878 = vmul.f32 %v846, %v870
        %v879 = vmul.f32 %v847, %v871
        %v880 = vld [vmem:[%s7] sm:$0xff]
        %v881 = vld [vmem:[%s8] sm:$0x1]
        %v883 = vlaneseq
        %v884 = vshrl.u32 %v883, 7
        %v885 = vsub.s32 0, %v884
        %v886 = vrot.slane %v881, %v885
        %vm888 = vcmask 64512
        %v890 = vsel %vm888, %v699, 0
        %892 = vmatprep.subr.mxu0 0.0
        %893 = vmatpush1.msra.mxu0 %v880
        %894 = vmatprep.subr.mxu0 0.0
        %895 = vmatpush1.msra.mxu0 0.0
        %896 = vmatprep.subr.mxu0 0.0
        %897 = vmatpush1.msra.mxu0 0.0
        %898 = vmatprep.subr.mxu0 0.0
        %899 = vmatpush1.msra.mxu0 0.0
        %900 = vmatprep.subr.mxu0 0.0
        %901 = vmatpush1.msra.mxu0 0.0
        %902 = vmatprep.subr.mxu0 0.0
        %903 = vmatpush1.msra.mxu0 0.0
        %904 = vmatprep.subr.mxu0 0.0
        %905 = vmatpush1.msra.mxu0 0.0
        %906 = vmatprep.subr.mxu0 0.0
        %907 = vmatpush1.msra.mxu0 0.0
        %908 = vmatprep.subr.mxu0 0.0
        %909 = vmatpush1.msra.mxu0 0.0
        %910 = vmatprep.subr.mxu0 0.0
        %911 = vmatpush1.msra.mxu0 0.0
        %912 = vmatprep.subr.mxu0 0.0
        %913 = vmatpush1.msra.mxu0 0.0
        %914 = vmatprep.subr.mxu0 0.0
        %915 = vmatpush1.msra.mxu0 0.0
        %916 = vmatprep.subr.mxu0 0.0
        %917 = vmatpush1.msra.mxu0 0.0
        %918 = vmatprep.subr.mxu0 0.0
        %919 = vmatpush1.msra.mxu0 0.0
        %920 = vmatprep.subr.mxu0 0.0
        %921 = vmatpush1.msra.mxu0 0.0
        %922 = vmatprep.subr.mxu0 0.0
        %923 = vmatpush1.msra.mxu0 0.0
        %924 = vmatprep.subr.mxu0 0.0
        %925 = vmatpush1.msra.mxu0 0.0
        %926 = vmatprep.subr.mxu0 0.0
        %927 = vmatpush1.msra.mxu0 0.0
        %928 = vmatprep.subr.mxu0 0.0
        %929 = vmatpush1.msra.mxu0 0.0
        %930 = vmatprep.subr.mxu0 0.0
        %931 = vmatpush1.msra.mxu0 0.0
        %932 = vmatprep.subr.mxu0 0.0
        %933 = vmatpush1.msra.mxu0 0.0
        %934 = vmatprep.subr.mxu0 0.0
        %935 = vmatpush1.msra.mxu0 0.0
        %936 = vmatprep.subr.mxu0 0.0
        %937 = vmatpush1.msra.mxu0 0.0
        %938 = vmatprep.subr.mxu0 0.0
        %939 = vmatpush1.msra.mxu0 0.0
        %940 = vmatprep.subr.mxu0 0.0
        %941 = vmatpush1.msra.mxu0 0.0
        %942 = vmatprep.subr.mxu0 0.0
        %943 = vmatpush1.msra.mxu0 0.0
        %944 = vmatprep.subr.mxu0 0.0
        %945 = vmatpush1.msra.mxu0 0.0
        %946 = vmatprep.subr.mxu0 0.0
        %947 = vmatpush1.msra.mxu0 0.0
        %948 = vmatprep.subr.mxu0 0.0
        %949 = vmatpush1.msra.mxu0 0.0
        %950 = vmatprep.subr.mxu0 0.0
        %951 = vmatpush1.msra.mxu0 0.0
        %952 = vmatprep.subr.mxu0 0.0
        %953 = vmatpush1.msra.mxu0 0.0
        %954 = vmatprep.subr.mxu0 0.0
        %955 = vmatpush1.msra.mxu0 0.0
        %956 = vmatprep.mubr.f32.mxu0 0.0
        %957 = vmatmul.mubr.f32.gmra.mrb[0].mxu0 %v890
        %v958 = vpop.f32.mrb[0].mxu0
        %v959 = vadd.f32 %v886, %v958
        %v960 = vpop.f32.mrb[0].mxu0
        %961 = vdwg.mxu0
        %v962 = vxor.u32 %v959, 2147483648
        %v963 = vmul.f32 %v962, 1.442695
        %v964 = vpow.pop %v963
        %v965 = vadd.f32 %v964, 1.0
        %v966 = vrcp.pop %v965
        %v967 = vmul.f32 1.0, %v966
        %v968 = vld [vmem:[%s9] sm:$0x1]
        %v970 = vlaneseq
        %v971 = vshrl.u32 %v970, 7
        %v972 = vsub.s32 0, %v971
        %v973 = vrot.slane %v968, %v972
        %v975 = vmul.f32 %v872, %v973
        %v976 = vmul.f32 %v873, %v973
        %v977 = vmul.f32 %v874, %v973
        %v978 = vmul.f32 %v875, %v973
        %v979 = vmul.f32 %v876, %v973
        %v980 = vmul.f32 %v877, %v973
        %v981 = vmul.f32 %v878, %v973
        %v982 = vmul.f32 %v879, %v973
        %v983 = vsel %vm888, %v975, 0.0
        %984 = vadd.xlane.f32.xlu0 %v983
        %v985 = vpop.xlane.xlu0 %984
        %v986 = vsel %vm888, %v976, 0.0
        %987 = vadd.xlane.f32.xlu0 %v986
        %v988 = vpop.xlane.xlu0 %987
        %v989 = vsel %vm888, %v977, 0.0
        %990 = vadd.xlane.f32.xlu0 %v989
        %v991 = vpop.xlane.xlu0 %990
        %v992 = vsel %vm888, %v978, 0.0
        %993 = vadd.xlane.f32.xlu0 %v992
        %v994 = vpop.xlane.xlu0 %993
        %v995 = vsel %vm888, %v979, 0.0
        %996 = vadd.xlane.f32.xlu0 %v995
        %v997 = vpop.xlane.xlu0 %996
        %v998 = vsel %vm888, %v980, 0.0
        %999 = vadd.xlane.f32.xlu0 %v998
        %v1000 = vpop.xlane.xlu0 %999
        %v1001 = vsel %vm888, %v981, 0.0
        %1002 = vadd.xlane.f32.xlu0 %v1001
        %v1003 = vpop.xlane.xlu0 %1002
        %v1004 = vsel %vm888, %v982, 0.0
        %1005 = vadd.xlane.f32.xlu0 %v1004
        %v1006 = vpop.xlane.xlu0 %1005
        %v1007 = vld [vmem:[%s10] sm:$0x1]
        %v1009 = vlaneseq
        %v1010 = vshrl.u32 %v1009, 7
        %v1011 = vsub.s32 0, %v1010
        %v1012 = vrot.slane %v1007, %v1011
        %v1014 = vmul.f32 %v699, %v1012
        %v1015 = vsel %vm888, %v1014, 0.0
        %1016 = vadd.xlane.f32.xlu0 %v1015
        %v1017 = vpop.xlane.xlu0 %1016
        %v1018 = vadd.f32 %v985, %v1017
        %v1019 = vadd.f32 %v988, %v1017
        %v1020 = vadd.f32 %v991, %v1017
        %v1021 = vadd.f32 %v994, %v1017
        %v1022 = vadd.f32 %v997, %v1017
        %v1023 = vadd.f32 %v1000, %v1017
        %v1024 = vadd.f32 %v1003, %v1017
        %v1025 = vadd.f32 %v1006, %v1017
        %s1026 = sld [smem:[#allocation2]]
        %v1027 = vstv %s1026
        %v1028 = vadd.f32 %v1018, %v1027
        %v1029 = vadd.f32 %v1019, %v1027
        %v1030 = vadd.f32 %v1020, %v1027
        %v1031 = vadd.f32 %v1021, %v1027
        %v1032 = vadd.f32 %v1022, %v1027
        %v1033 = vadd.f32 %v1023, %v1027
        %v1034 = vadd.f32 %v1024, %v1027
        %v1035 = vadd.f32 %v1025, %v1027
        %v1036 = vxor.u32 %v1028, 2147483648
        %v1037 = vxor.u32 %v1029, 2147483648
        %v1038 = vxor.u32 %v1030, 2147483648
        %v1039 = vxor.u32 %v1031, 2147483648
        %v1040 = vxor.u32 %v1032, 2147483648
        %v1041 = vxor.u32 %v1033, 2147483648
        %v1042 = vxor.u32 %v1034, 2147483648
        %v1043 = vxor.u32 %v1035, 2147483648
        %v1044 = vmul.f32 %v1036, 1.442695
        %v1045 = vpow.pop %v1044
        %v1046 = vmul.f32 %v1037, 1.442695
        %v1047 = vpow.pop %v1046
        %v1048 = vmul.f32 %v1038, 1.442695
        %v1049 = vpow.pop %v1048
        %v1050 = vmul.f32 %v1039, 1.442695
        %v1051 = vpow.pop %v1050
        %v1052 = vmul.f32 %v1040, 1.442695
        %v1053 = vpow.pop %v1052
        %v1054 = vmul.f32 %v1041, 1.442695
        %v1055 = vpow.pop %v1054
        %v1056 = vmul.f32 %v1042, 1.442695
        %v1057 = vpow.pop %v1056
        %v1058 = vmul.f32 %v1043, 1.442695
        %v1059 = vpow.pop %v1058
        %v1060 = vadd.f32 %v1045, 1.0
        %v1061 = vadd.f32 %v1047, 1.0
        %v1062 = vadd.f32 %v1049, 1.0
        %v1063 = vadd.f32 %v1051, 1.0
        %v1064 = vadd.f32 %v1053, 1.0
        %v1065 = vadd.f32 %v1055, 1.0
        %v1066 = vadd.f32 %v1057, 1.0
        %v1067 = vadd.f32 %v1059, 1.0
        %v1068 = vrcp.pop %v1060
        %v1069 = vmul.f32 1.0, %v1068
        %v1070 = vrcp.pop %v1061
        %v1071 = vmul.f32 1.0, %v1070
        %v1072 = vrcp.pop %v1062
        %v1073 = vmul.f32 1.0, %v1072
        %v1074 = vrcp.pop %v1063
        %v1075 = vmul.f32 1.0, %v1074
        %v1076 = vrcp.pop %v1064
        %v1077 = vmul.f32 1.0, %v1076
        %v1078 = vrcp.pop %v1065
        %v1079 = vmul.f32 1.0, %v1078
        %v1080 = vrcp.pop %v1066
        %v1081 = vmul.f32 1.0, %v1080
        %v1082 = vrcp.pop %v1067
        %v1083 = vmul.f32 1.0, %v1082
        %v1084 = vmul.f32 %v450, %v967
        %v1085 = vmul.f32 %v451, %v967
        %v1086 = vmul.f32 %v452, %v967
        %v1087 = vmul.f32 %v453, %v967
        %v1088 = vmul.f32 %v454, %v967
        %v1089 = vmul.f32 %v455, %v967
        %v1090 = vmul.f32 %v456, %v967
        %v1091 = vmul.f32 %v457, %v967
        %v1092 = vmul.f32 %v1084, %v1069
        %v1093 = vmul.f32 %v1085, %v1071
        %v1094 = vmul.f32 %v1086, %v1073
        %v1095 = vmul.f32 %v1087, %v1075
        %v1096 = vmul.f32 %v1088, %v1077
        %v1097 = vmul.f32 %v1089, %v1079
        %v1098 = vmul.f32 %v1090, %v1081
        %v1099 = vmul.f32 %v1091, %v1083
        %1100 = vst.msk [vmem:[%s449] sm:$0xff] %vm458, %v1092
        %1101 = vst.msk [vmem:[%s449 + $0x8] sm:$0xff] %vm458, %v1093
        %1102 = vst.msk [vmem:[%s449 + $0x10] sm:$0xff] %vm458, %v1094
        %1103 = vst.msk [vmem:[%s449 + $0x18] sm:$0xff] %vm458, %v1095
        %1104 = vst.msk [vmem:[%s449 + $0x20] sm:$0xff] %vm458, %v1096
        %1105 = vst.msk [vmem:[%s449 + $0x28] sm:$0xff] %vm458, %v1097
        %1106 = vst.msk [vmem:[%s449 + $0x30] sm:$0xff] %vm458, %v1098
        %1107 = vst.msk [vmem:[%s449 + $0x38] sm:$0xff] %vm458, %v1099
        %s1108 = sand.u32 %s311, 1
        %s1109 = scalar_lea.sflag [#allocation5], %s1108
        %s1110 = sand.u32 %s311, 1
        %s1111 = smul.addr %s1110, 64
        %s1112 = scalar_lea.vmem [#allocation6], %s1111
        // Predicated region
        $region73: #{tpu_custom_call.1} parent=67 // pred_check
          %p1113 = pneg %p321
        $region74: #{tpu_custom_call.1} parent=67 // pred_check_branch
          %1115 = sbr.rel (%p1113) target = $region76
        $region75: #{tpu_custom_call.1} parent=67 // pred_region
          %s1117 = ssub.s32 1024, 1024
          %1118 = vsyncadd %s1109, %s1117
          %s1119 = smul.addr %s34, 8
          %s1120 = sadd.s32 %s35, %s1119
          %s1121 = smul.addr %s1120, 128
          %s1122 = scalar_lea.hbm %s12, %s1121
          %s1123 = sshll.u32 %s1112, 4
          %s1124 = int_to_ptr.vmem [resolvable:$true] %s1123
          %1129 = dma.vmem_to_hbm [thread:$0]  %s1124, 1024, %s1122, %s1109, 128, 128, 8
        $region76: #{tpu_custom_call.1} parent=67 // pred_fallthru
          _
      $region68: #{tpu_custom_call.1} parent=5 // pred_fallthru
        _
      %p1130 = scmp.le.s32.totalorder 2, %s25
      // Predicated region
      $region77: #{tpu_custom_call.1} parent=5 // pred_check
        %p1131 = pneg %p1130
      $region78: #{tpu_custom_call.1} parent=5 // pred_check_branch
        %1133 = sbr.rel (%p1131) target = $region80
      $region79: #{tpu_custom_call.1} parent=5 // pred_region
        %s1134 = ssub.s32 %s25, 2
        // Predicated region
        $region81: #{tpu_custom_call.1} parent=79 // pred_check
          %p1135 = pneg %p327
        $region82: #{tpu_custom_call.1} parent=79 // pred_check_branch
          %1137 = sbr.rel (%p1135) target = $region84
        $region83: #{tpu_custom_call.1} parent=79 // pred_region
          %s1138 = sand.u32 %s312, 1
          %s1139 = scalar_lea.sflag [#allocation5], %s1138
          %s1140 = sand.u32 %s312, 1
          %s1141 = smul.addr %s1140, 64
          %s1142 = scalar_lea.vmem [#allocation6], %s1141
          %1143 = dma.done %s1139, 1024
        $region84: #{tpu_custom_call.1} parent=79 // pred_fallthru
          _
      $region80: #{tpu_custom_call.1} parent=5 // pred_fallthru
        _
    $region6: #{tpu_custom_call.1} parent=1 // loop_footer
      %s29 = sadd.s32 1, %s25
    $region7: #{tpu_custom_call.1} parent=1 // loop_footer_branch
      %24 = sbr.rel target = $region3
    $region8: #{tpu_custom_call.1} parent=1 // loop_exit
      _
    %1144 = vsyncpa [#allocation4], 1
    %s1145 = scalar_lea.sflag [#allocation4], 1
    %1146 = vsyncpa %s1145, 1
    %1147 = vsyncpa [#allocation5], 1
    %s1148 = scalar_lea.sflag [#allocation5], 1
    %1149 = vsyncpa %s1148, 1

</llo_original>
